<compile_context>
chip_gen: v7x
topology: tpu7x:2x2x1
jax: 0.10.0
libtpu: 0.0.40
codegen_flags: <defaults>
</compile_context>

<pallas_src>
import copy
import functools

import jax
import jax.numpy as jnp
from jax.experimental import pallas as pl
from jax.experimental.pallas import tpu as pltpu


def _round_up(x, m):
    return (x + m - 1) // m * m


def _pick_tile(dim, candidates):
    """Largest candidate that evenly divides `dim`, or 0 if none does."""
    for c in candidates:
        if dim % c == 0:
            return c
    return 0


# ---------------------------------------------------------------------------
# Kernels
# ---------------------------------------------------------------------------
def _linear_kernel_kloop(x_ref, w_ref, b_ref, o_ref, acc_ref):
    """One (tm, tn) output tile; K reduction along grid axis 2."""
    k = pl.program_id(2)

    @pl.when(k == 0)
    def _():
        acc_ref[...] = jnp.zeros_like(acc_ref)

    acc_ref[...] += jnp.dot(
        x_ref[...].astype(jnp.bfloat16),          # bf16 x bf16 -> f32 acc (MXU native)
        w_ref[...],
        preferred_element_type=jnp.float32,
    )

    @pl.when(k == pl.num_programs(2) - 1)
    def _():
        # Bias epilogue: added exactly once, in f32, then cast to output dtype.
        o_ref[...] = (acc_ref[...] + b_ref[...]).astype(o_ref.dtype)


def _linear_kernel_single(x_ref, w_ref, b_ref, o_ref):
    """Single-K variant: no scratch accumulator, no pl.when branches."""
    o_ref[...] = (
        jnp.dot(
            x_ref[...].astype(jnp.bfloat16),
            w_ref[...],
            preferred_element_type=jnp.float32,
        )
        + b_ref[...]
    ).astype(o_ref.dtype)


# ---------------------------------------------------------------------------
# Pallas-backed Linear on prepared (pre-transposed, pre-padded, bf16) weights
# ---------------------------------------------------------------------------
@functools.partial(jax.jit, static_argnames=("out_features",))
def _pallas_linear_prepared(x, w_t, b2, out_features):
    """y = x @ w_t + b2.

    w_t: [hidden_p, out_p] bf16 (pre-transposed, lane-padded at prepare time)
    b2 : [1, out_p] f32
    Returns [batch, out_features] in x.dtype.
    """
    batch, hidden = x.shape
    hidden_p, out_p = w_t.shape

    # --- tile selection (all static under jit) -----------------------------
    # M: cover the whole batch in one tile whenever possible so the weight
    # streams from HBM exactly once.
    batch_p = _round_up(max(batch, 8), 8)
    if batch_p <= 512:
        tm = batch_p
    else:
        tm = _pick_tile(batch_p, (512, 256, 128))
        if not tm:
            # Awkward batch: pad instead of collapsing tm (keeps W re-reads low).
            tm = 512
            batch_p = _round_up(batch_p, 512)

    # K: full-hidden tile (single K step) whenever it fits; else 1024/512.
    if hidden_p <= 2048:
        tk = hidden_p
    else:
        tk = _pick_tile(hidden_p, (2048, 1024, 512))  # hidden_p is a 512-multiple

    # N: as large as possible (lane-dense, unmasked vst), up to 1024.
    if out_p <= 1024:
        tn = out_p
    else:
        tn = _pick_tile(out_p, (1024, 512))           # out_p is a 512-multiple

    # v7x megacore: make sure the parallel (M, N) grid has >= 2 blocks when we
    # can do so while keeping tn a multiple of 128.
    if (batch_p // tm) * (out_p // tn) < 2 and tn % 256 == 0:
        tn //= 2

    k_steps = hidden_p // tk
    grid_mn = (batch_p // tm, out_p // tn)

    # --- pad x only when needed (common case: already aligned) -------------
    if batch_p != batch or hidden_p != hidden:
        x_p = jnp.pad(x, ((0, batch_p - batch), (0, hidden_p - hidden)))
    else:
        x_p = x

    # --- build grid spec ----------------------------------------------------
    if k_steps == 1:
        kernel = _linear_kernel_single
        grid = grid_mn
        in_specs = [
            pl.BlockSpec((tm, tk), lambda i, j: (i, 0)),   # x tile
            pl.BlockSpec((tk, tn), lambda i, j: (0, j)),   # W^T tile (bf16)
            pl.BlockSpec((1, tn), lambda i, j: (0, j)),    # bias tile (f32)
        ]
        out_specs = pl.BlockSpec((tm, tn), lambda i, j: (i, j))
        scratch_shapes = []
        dim_sem = ("parallel", "parallel")
    else:
        kernel = _linear_kernel_kloop
        grid = grid_mn + (k_steps,)
        in_specs = [
            pl.BlockSpec((tm, tk), lambda i, j, k: (i, k)),
            pl.BlockSpec((tk, tn), lambda i, j, k: (k, j)),
            pl.BlockSpec((1, tn), lambda i, j, k: (0, j)),
        ]
        out_specs = pl.BlockSpec((tm, tn), lambda i, j, k: (i, j))
        scratch_shapes = [pltpu.VMEM((tm, tn), jnp.float32)]
        dim_sem = ("parallel", "parallel", "arbitrary")

    out_padded = pl.pallas_call(
        kernel,
        out_shape=jax.ShapeDtypeStruct((batch_p, out_p), x.dtype),
        grid_spec=pltpu.PrefetchScalarGridSpec(
            num_scalar_prefetch=0,
            grid=grid,
            in_specs=in_specs,
            out_specs=out_specs,
            scratch_shapes=scratch_shapes,
        ),
        compiler_params=pltpu.CompilerParams(
            dimension_semantics=dim_sem,
            vmem_limit_bytes=48 << 20,   # safe on v7x (64 MiB), raises v5e default
        ),
    )(x_p, w_t, b2)

    if batch_p != batch or out_p != out_features:
        return out_padded[:batch, :out_features]
    return out_padded


def prepare_linear_params(weight, bias):
    """One-time per-adapter prep (never per forward):
    transpose [out, hidden] -> [hidden, out], pad so tiles never collapse,
    and store the weight in bf16 (f32 accumulation happens in-kernel)."""
    out_features, hidden = weight.shape

    if hidden <= 2048:
        hidden_p = _round_up(hidden, 128)
    else:
        hidden_p = _round_up(hidden, 512)
    if out_features <= 1024:
        out_p = _round_up(out_features, 128)
    else:
        out_p = _round_up(out_features, 512)

    w_t = jnp.pad(
        weight.T, ((0, hidden_p - hidden), (0, out_p - out_features))
    ).astype(jnp.bfloat16)
    b2 = jnp.pad(
        bias.reshape(1, out_features), ((0, 0), (0, out_p - out_features))
    ).astype(jnp.float32)
    # TODO(synk): optional fp8 (e4m3) weight storage on v7x only, after
    # validating classifier-logit precision.
    return {"weight_t": w_t, "bias2": b2, "out_features": int(out_features)}


# ---------------------------------------------------------------------------
# ModulesToSaveWrapper
# ---------------------------------------------------------------------------
class ModulesToSaveWrapper:
    """JAX port of the PEFT ModulesToSaveWrapper.

    `module_to_save` is represented by its parameter dict
    {"weight": [out, hidden], "bias": [out]}; the forward computation (Linear)
    runs in the tiled Pallas kernel above.  Adapter dispatch is host-side.
    """

    def __init__(self, module_params, adapter_name):
        self.original_module = module_params
        self._original_prepared = prepare_linear_params(
            module_params["weight"], module_params["bias"]
        )
        self.modules_to_save = {}
        self._prepared = {}
        self.update(adapter_name)
        self.active_adapter = adapter_name

    def update(self, adapter_name):
        # deepcopy semantics: an independent copy of the original params,
        # plus one-time transpose/pad/bf16-cast so forward never re-lays-out W.
        params = copy.deepcopy(self.original_module)
        self.modules_to_save[adapter_name] = params
        self._prepared[adapter_name] = prepare_linear_params(
            params["weight"], params["bias"]
        )

    def forward(self, x):
        if self.active_adapter not in self.modules_to_save:
            prepared = self._original_prepared
        else:
            prepared = self._prepared[self.active_adapter]
        return _pallas_linear_prepared(
            x, prepared["weight_t"], prepared["bias2"], prepared["out_features"]
        )

    __call__ = forward


# ---------------------------------------------------------------------------
# Demo / correctness check
# ---------------------------------------------------------------------------
def _init_linear(key, batch, hidden, out_features):
    """Deterministic init mimicking nn.Linear's uniform(-1/sqrt(in), 1/sqrt(in))."""
    k_x, k_w, k_b = jax.random.split(key, 3)
    x = jax.random.normal(k_x, (batch, hidden), dtype=jnp.float32)
    bound = 1.0 / jnp.sqrt(jnp.float32(hidden))
    weight = jax.random.uniform(
        k_w, (out_features, hidden), minval=-bound, maxval=bound, dtype=jnp.float32
    )
    bias = jax.random.uniform(
        k_b, (out_features,), minval=-bound, maxval=bound, dtype=jnp.float32
    )
    return x, weight, bias


def _bf16_ref(x, weight, bias):
    """Reference matching the kernel's numerics: bf16 inputs, f32 accumulate."""
    xb = x.astype(jnp.bfloat16).astype(jnp.float32)
    wb = weight.astype(jnp.bfloat16).astype(jnp.float32)
    return xb @ wb.T + bias


if __name__ == "__main__":
    key = jax.random.PRNGKey(0)
    key1, key2, key3 = jax.random.split(key, 3)

    # --- case 1: tiny classification head (single-K simplified kernel) -----
    batch, hidden, out_features = 8, 32, 16
    x, weight, bias = _init_linear(key1, batch, hidden, out_features)
    wrapper = ModulesToSaveWrapper(
        {"weight": weight, "bias": bias}, adapter_name="default"
    )
    y = jax.block_until_ready(wrapper(x))
    assert y.shape == (batch, out_features)
    assert jnp.allclose(y, _bf16_ref(x, weight, bias), atol=1e-2, rtol=1e-2)

    # Adapter dispatch: missing adapter falls back to the original module.
    wrapper.active_adapter = "missing"
    y_orig = jax.block_until_ready(wrapper(x))
    assert jnp.allclose(y, y_orig, atol=1e-6, rtol=1e-6)
    wrapper.active_adapter = "default"

    # --- case 2: non-128-aligned hidden/out, aligned batch (no x pad path) --
    batch2, hidden2, out2 = 16, 384, 384
    x2, weight2, bias2 = _init_linear(key2, batch2, hidden2, out2)
    wrapper2 = ModulesToSaveWrapper(
        {"weight": weight2, "bias": bias2}, adapter_name="default"
    )
    y2 = jax.block_until_ready(wrapper2(x2))
    assert y2.shape == (batch2, out2)
    assert jnp.allclose(y2, _bf16_ref(x2, weight2, bias2), atol=1e-2, rtol=1e-2)

    # --- case 3: hidden > 2048 -> multi-step K reduction + K padding path ---
    batch3, hidden3, out3 = 24, 2304, 384
    x3, weight3, bias3 = _init_linear(key3, batch3, hidden3, out3)
    wrapper3 = ModulesToSaveWrapper(
        {"weight": weight3, "bias": bias3}, adapter_name="default"
    )
    y3 = jax.block_until_ready(wrapper3(x3))
    assert y3.shape == (batch3, out3)
    assert jnp.allclose(y3, _bf16_ref(x3, weight3, bias3), atol=2e-2, rtol=2e-2)

    print("KERNEL_OK")
</pallas_src>

<mosaic_0001>
module attributes {stable_mosaic.version = 11 : i64} {
  func.func @_linear_kernel_single(%arg0: i32, %arg1: i32, %arg2: memref<8x128xf32, #tpu.memory_space<vmem>>, %arg3: memref<128x128xbf16, #tpu.memory_space<vmem>>, %arg4: memref<1x128xf32, #tpu.memory_space<vmem>>, %arg5: memref<8x128xf32, #tpu.memory_space<vmem>>) attributes {dimension_semantics = [#tpu.dimension_semantics<parallel>, #tpu.dimension_semantics<parallel>], iteration_bounds = array<i64: 1, 1>, scalar_prefetch = 0 : i64, scratch_operands = 0 : i64, tpu.core_type = #tpu.core_type<tc>, window_params = [{transform_indices = @transform_0, window_bounds = array<i64: 8, 128>}, {transform_indices = @transform_1, window_bounds = array<i64: 128, 128>}, {transform_indices = @transform_2, window_bounds = array<i64: 1, 128>}, {transform_indices = @transform_3, window_bounds = array<i64: 8, 128>}]} {
    %c0 = arith.constant 0 : index
    %c0_0 = arith.constant 0 : index
    %0 = vector.load %arg2[%c0, %c0_0] : memref<8x128xf32, #tpu.memory_space<vmem>>, vector<8x128xf32>
    %1 = arith.truncf %0 : vector<8x128xf32> to vector<8x128xbf16>
    %c0_1 = arith.constant 0 : index
    %c0_2 = arith.constant 0 : index
    %2 = vector.load %arg3[%c0_1, %c0_2] : memref<128x128xbf16, #tpu.memory_space<vmem>>, vector<128x128xbf16>
    %cst = arith.constant dense<0.000000e+00> : vector<8x128xf32>
    %3 = tpu.matmul %1, %2, %cst {dimension_numbers = #tpu.dot_dimension_numbers<[1], [0], [0], [1], [0, 0, 1, 1], [], []>} : vector<8x128xbf16>, vector<128x128xbf16>, vector<8x128xf32> -> vector<8x128xf32>
    %c0_3 = arith.constant 0 : index
    %c0_4 = arith.constant 0 : index
    %4 = vector.load %arg4[%c0_3, %c0_4] : memref<1x128xf32, #tpu.memory_space<vmem>>, vector<1x128xf32>
    %5 = vector.broadcast %4 : vector<1x128xf32> to vector<8x128xf32>
    %6 = arith.addf %3, %5 : vector<8x128xf32>
    %c0_5 = arith.constant 0 : index
    %c0_6 = arith.constant 0 : index
    %7 = vector.load %arg5[%c0_5, %c0_6] : memref<8x128xf32, #tpu.memory_space<vmem>>, vector<8x128xf32>
    tpu.vector_store %arg5[%c0_5, %c0_6], %6 {strides = array<i32>} : memref<8x128xf32, #tpu.memory_space<vmem>>, vector<8x128xf32>,
    return
  }
  func.func @transform_0(%arg0: i32, %arg1: i32) -> (i32, i32) {
    %c0_i32 = arith.constant 0 : i32
    %c0_i32_0 = arith.constant 0 : i32
    return %arg0, %c0_i32 : i32, i32
  }
  func.func @transform_1(%arg0: i32, %arg1: i32) -> (i32, i32) {
    %c0_i32 = arith.constant 0 : i32
    %c0_i32_0 = arith.constant 0 : i32
    return %c0_i32, %arg1 : i32, i32
  }
  func.func @transform_2(%arg0: i32, %arg1: i32) -> (i32, i32) {
    %c0_i32 = arith.constant 0 : i32
    %c0_i32_0 = arith.constant 0 : i32
    return %c0_i32, %arg1 : i32, i32
  }
  func.func @transform_3(%arg0: i32, %arg1: i32) -> (i32, i32) {
    %c0_i32 = arith.constant 0 : i32
    return %arg0, %arg1 : i32, i32
  }
}

</mosaic_0001>

<llo_original>
// kernel: _pallas_linear_prepared.1
$region0: #{_pallas_linear_prepared.1}
  #allocation0 [shape = 'u32[]', space=smem, size = 0x4, offset = 0x4, fixed_abs, tag = 'smem constant byte address 0x4 - core index']
  #allocation1 [shape = 'u32[144,128]{1,0:T(1,128)}', space=vmem, size = 0x12000, scoped, tag = 'internal scratch']
  %s0 = inlined_call_operand.vmem [shape: f32[8,128], index: 0, kind: input, shape index: {}]
  %s1 = inlined_call_operand.hbm [shape: bf16[128,128], index: 1, kind: input, shape index: {}]
  %s2 = inlined_call_operand.vmem [shape: f32[1,128], index: 2, kind: input, shape index: {}]
  %s3 = inlined_call_operand.hbm [shape: f32[8,128], index: 3, kind: output, shape index: {}]
  %s4 = sld [smem:[#allocation0]]
  $region26: #{_pallas_linear_prepared.1} parent=0
    _
  %s6 = ssub.s32 1, %s4
  %s7 = scalar_select 0, %s6, %s4
  $region1: #{_pallas_linear_prepared.1} parent=0
    #allocation2 [shape = 'u8[32768]{0}', space=vmem, size = 0x8000, scoped, tag = 'input window, operand 1, single buffered']
    #allocation3 [shape = 's32[1]{0}', space=sflag, size = 0x4, scoped, tag = 'scoped memory for _pallas_linear_prepared.1']
    #allocation4 [shape = 's32[1]{0}', space=sflag, size = 0x4, scoped, tag = 'scoped memory for _pallas_linear_prepared.1']
    #allocation5 [shape = 'u8[4096]{0}', space=vmem, size = 0x1000, scoped, tag = 'output window, operand 0, single buffered']
    %8 = vsyncpa [#allocation3], 0
    %9 = vsyncpa [#allocation4], 0
    // Predicated region
    $region2: #{_pallas_linear_prepared.1} parent=1 // pred_check
      _
    $region3: #{_pallas_linear_prepared.1} parent=1 // pred_check_branch
      %11 = sbr.rel (0) target = $region5
    $region4: #{_pallas_linear_prepared.1} parent=1 // pred_region
      _
    $region5: #{_pallas_linear_prepared.1} parent=1 // pred_fallthru
      _
    // Predicated region
    $region6: #{_pallas_linear_prepared.1} parent=1 // pred_check
      _
    $region7: #{_pallas_linear_prepared.1} parent=1 // pred_check_branch
      %13 = sbr.rel (0) target = $region9
    $region8: #{_pallas_linear_prepared.1} parent=1 // pred_region
      %s15 = ssub.s32 1024, 1024
      %16 = vsyncadd [#allocation3], %s15
      %s17 = sshll.u32 [#allocation2], 4
      %s18 = int_to_ptr.vmem [resolvable:$true] %s17
      %23 = dma.hbm_to_vmem [thread:$0]  %s1, 1024, %s18, [#allocation3], 64, 64, 4
    $region9: #{_pallas_linear_prepared.1} parent=1 // pred_fallthru
      _
    // Predicated region
    $region10: #{_pallas_linear_prepared.1} parent=1 // pred_check
      _
    $region11: #{_pallas_linear_prepared.1} parent=1 // pred_check_branch
      %25 = sbr.rel (0) target = $region13
    $region12: #{_pallas_linear_prepared.1} parent=1 // pred_region
      _
    $region13: #{_pallas_linear_prepared.1} parent=1 // pred_fallthru
      _
    // Predicated region
    $region14: #{_pallas_linear_prepared.1} parent=1 // pred_check
      _
    $region15: #{_pallas_linear_prepared.1} parent=1 // pred_check_branch
      %27 = sbr.rel (0) target = $region17
    $region16: #{_pallas_linear_prepared.1} parent=1 // pred_region
      %28 = dma.done [#allocation3], 1024
    $region17: #{_pallas_linear_prepared.1} parent=1 // pred_fallthru
      _
    %v30 = vld [vmem:[%s0] sm:$0xff]
    %v31 = vpack.c.bf16 %v30, %v30
    %v32 = vld [vmem:[#allocation2] sm:$0xf]
    %v33 = vld [vmem:[#allocation2 + $0x4] sm:$0xf]
    %v34 = vld [vmem:[#allocation2 + $0x8] sm:$0xf]
    %v35 = vld [vmem:[#allocation2 + $0xc] sm:$0xf]
    %v36 = vld [vmem:[#allocation2 + $0x10] sm:$0xf]
    %v37 = vld [vmem:[#allocation2 + $0x14] sm:$0xf]
    %v38 = vld [vmem:[#allocation2 + $0x18] sm:$0xf]
    %v39 = vld [vmem:[#allocation2 + $0x1c] sm:$0xf]
    %v40 = vld [vmem:[#allocation2 + $0x20] sm:$0xf]
    %v41 = vld [vmem:[#allocation2 + $0x24] sm:$0xf]
    %v42 = vld [vmem:[#allocation2 + $0x28] sm:$0xf]
    %v43 = vld [vmem:[#allocation2 + $0x2c] sm:$0xf]
    %v44 = vld [vmem:[#allocation2 + $0x30] sm:$0xf]
    %v45 = vld [vmem:[#allocation2 + $0x34] sm:$0xf]
    %v46 = vld [vmem:[#allocation2 + $0x38] sm:$0xf]
    %v47 = vld [vmem:[#allocation2 + $0x3c] sm:$0xf]
    %v48 = vld [vmem:[%s2] sm:$0x1]
    %v50 = vlaneseq
    %v51 = vshrl.u32 %v50, 7
    %v52 = vsub.s32 0, %v51
    %v53 = vrot.slane %v48, %v52
    %v71 = vunpack.c.l.b16 %v32
    %v72 = vunpack.c.l.b16 %v33
    %v73 = vunpack.c.l.b16 %v34
    %v74 = vunpack.c.l.b16 %v35
    %v75 = vunpack.c.l.b16 %v36
    %v76 = vunpack.c.l.b16 %v37
    %v77 = vunpack.c.l.b16 %v38
    %v78 = vunpack.c.l.b16 %v39
    %v79 = vunpack.c.l.b16 %v40
    %v80 = vunpack.c.l.b16 %v41
    %v81 = vunpack.c.l.b16 %v42
    %v82 = vunpack.c.l.b16 %v43
    %v83 = vunpack.c.l.b16 %v44
    %v84 = vunpack.c.l.b16 %v45
    %v85 = vunpack.c.l.b16 %v46
    %v86 = vunpack.c.l.b16 %v47
    %v87 = vpack.c.b16 %v72, %v71
    %v88 = vpack.c.b16 %v74, %v73
    %v89 = vpack.c.b16 %v76, %v75
    %v90 = vpack.c.b16 %v78, %v77
    %v91 = vpack.c.b16 %v80, %v79
    %v92 = vpack.c.b16 %v82, %v81
    %v93 = vpack.c.b16 %v84, %v83
    %v94 = vpack.c.b16 %v86, %v85
    %103 = vmatprep.subr.bf16.mxu0 0
    %104 = vmatpush1.bf16.msra.mxu0 %v87
    %105 = vmatprep.subr.bf16.mxu0 0
    %106 = vmatpush1.bf16.msra.mxu0 %v88
    %107 = vmatprep.subr.bf16.mxu0 0
    %108 = vmatpush1.bf16.msra.mxu0 %v89
    %109 = vmatprep.subr.bf16.mxu0 0
    %110 = vmatpush1.bf16.msra.mxu0 %v90
    %111 = vmatprep.subr.bf16.mxu0 0
    %112 = vmatpush1.bf16.msra.mxu0 %v91
    %113 = vmatprep.subr.bf16.mxu0 0
    %114 = vmatpush1.bf16.msra.mxu0 %v92
    %115 = vmatprep.subr.bf16.mxu0 0
    %116 = vmatpush1.bf16.msra.mxu0 %v93
    %117 = vmatprep.subr.bf16.mxu0 0
    %118 = vmatpush1.bf16.msra.mxu0 %v94
    %119 = vmatprep.subr.bf16.mxu0 0
    %120 = vmatpush1.bf16.msra.mxu0 0
    %121 = vmatprep.subr.bf16.mxu0 0
    %122 = vmatpush1.bf16.msra.mxu0 0
    %123 = vmatprep.subr.bf16.mxu0 0
    %124 = vmatpush1.bf16.msra.mxu0 0
    %125 = vmatprep.subr.bf16.mxu0 0
    %126 = vmatpush1.bf16.msra.mxu0 0
    %127 = vmatprep.subr.bf16.mxu0 0
    %128 = vmatpush1.bf16.msra.mxu0 0
    %129 = vmatprep.subr.bf16.mxu0 0
    %130 = vmatpush1.bf16.msra.mxu0 0
    %131 = vmatprep.subr.bf16.mxu0 0
    %132 = vmatpush1.bf16.msra.mxu0 0
    %133 = vmatprep.subr.bf16.mxu0 0
    %134 = vmatpush1.bf16.msra.mxu0 0
    %135 = vmatprep.mubr.bf16.mxu0 0
    %136 = vmatmul.mubr.bf16.gmra.mrb[0].mxu0 %v31
    %v137 = vpop.f32.mrb[0].mxu0
    %v138 = vadd.f32 %v53, %v137
    %v139 = vpop.f32.mrb[0].mxu0
    %v140 = vpop.f32.mrb[0].mxu0
    %v141 = vpop.f32.mrb[0].mxu0
    %142 = vdwg.mxu0
    %143 = vst [vmem:[#allocation5] sm:$0xff] %v138
    // Predicated region
    $region18: #{_pallas_linear_prepared.1} parent=1 // pred_check
      _
    $region19: #{_pallas_linear_prepared.1} parent=1 // pred_check_branch
      %145 = sbr.rel (0) target = $region21
    $region20: #{_pallas_linear_prepared.1} parent=1 // pred_region
      %s147 = ssub.s32 128, 128
      %148 = vsyncadd [#allocation4], %s147
      %s150 = sshll.u32 [#allocation5], 4
      %s151 = int_to_ptr.vmem [resolvable:$true] %s150
      %153 = dma.vmem_to_hbm [thread:$0]  %s151, 128, %s3, [#allocation4]
    $region21: #{_pallas_linear_prepared.1} parent=1 // pred_fallthru
      _
    // Predicated region
    $region22: #{_pallas_linear_prepared.1} parent=1 // pred_check
      _
    $region23: #{_pallas_linear_prepared.1} parent=1 // pred_check_branch
      %155 = sbr.rel (0) target = $region25
    $region24: #{_pallas_linear_prepared.1} parent=1 // pred_region
      %156 = dma.done [#allocation4], 128
    $region25: #{_pallas_linear_prepared.1} parent=1 // pred_fallthru
      _
    %157 = vsyncpa [#allocation3], 1
    %158 = vsyncpa [#allocation4], 1

</llo_original>
